<compile_context>
chip_gen: v7x
topology: tpu7x:2x2x1
jax: 0.10.0
libtpu: 0.0.40
codegen_flags: <defaults>
</compile_context>

<pallas_src>
import functools

import jax
import jax.numpy as jnp
from jax.experimental import pallas as pl
from jax.experimental.pallas import tpu as pltpu


def _round_up(x, m):
    return (x + m - 1) // m * m


# --------------------------------------------------------------------------
# Pallas kernel 1: matmul with fused bias (+ optional tanh epilogue)
#   - full-K blocks (no K grid axis), bf16 operands, f32 accumulate
# --------------------------------------------------------------------------
def _matmul_bias_kernel(a_ref, b_ref, bias_ref, o_ref, *, activation):
    acc = jnp.dot(a_ref[...], b_ref[...], preferred_element_type=jnp.float32)
    r = acc + bias_ref[...]
    if activation == "tanh":
        r = jnp.tanh(r)
    o_ref[...] = r.astype(o_ref.dtype)


def matmul_bias(a, b, bias, activation=None, out_dtype=jnp.bfloat16):
    """a: [M, K], b: [K, N], bias: [N] -> [M, N] (out_dtype)."""
    M, K = a.shape
    _, N = b.shape
    a = a.astype(jnp.bfloat16)
    b = b.astype(jnp.bfloat16)
    bias2 = bias.astype(jnp.float32).reshape(1, N)

    # Pad K to a multiple of 16 (bf16 sublane packing); only hits the 7x7x3
    # first conv (K=147), everything else is already aligned.
    if K % 16 != 0:
        Kp = _round_up(K, 16)
        a = jnp.pad(a, ((0, 0), (0, Kp - K)))
        b = jnp.pad(b, ((0, Kp - K), (0, 0)))
        K = Kp

    # M tile: largest tile that divides M (pad M to x8 only if needed).
    def _pick_tm(m):
        for cand in (512, 256, 128, 64, 32, 16, 8):
            if m % cand == 0:
                return cand
        return None

    tm = _pick_tm(M)
    Mp = M
    if tm is None:
        Mp = _round_up(M, 8)
        a = jnp.pad(a, ((0, Mp - M), (0, 0)))
        tm = _pick_tm(Mp)

    # N tile: 256 (matches v6e/v7x MXU) when possible, else 128, else the
    # whole (small) N so the output never needs a slice copy.
    if N % 256 == 0:
        tn = 256
    elif N % 128 == 0:
        tn = 128
    else:
        tn = N

    out = pl.pallas_call(
        functools.partial(_matmul_bias_kernel, activation=activation),
        out_shape=jax.ShapeDtypeStruct((Mp, N), out_dtype),
        grid=(Mp // tm, N // tn),
        in_specs=[
            pl.BlockSpec((tm, K), lambda i, j: (i, 0)),
            pl.BlockSpec((K, tn), lambda i, j: (0, j)),
            pl.BlockSpec((1, tn), lambda i, j: (0, j)),
        ],
        out_specs=pl.BlockSpec((tm, tn), lambda i, j: (i, j)),
        compiler_params=pltpu.CompilerParams(
            dimension_semantics=("parallel", "parallel")),
    )(a, b, bias2)
    return out if Mp == M else out[:M]


# --------------------------------------------------------------------------
# Pallas kernel 2: InstanceNorm2d (+ optional ReLU / residual add)
#   - fused single-block kernel when HW*C is small
#   - tiled two-pass (stats + apply) kernels for large images
# --------------------------------------------------------------------------
def _inorm_fused_kernel(*refs, relu, eps, has_res):
    if has_res:
        x_ref, g_ref, b_ref, r_ref, o_ref = refs
    else:
        x_ref, g_ref, b_ref, o_ref = refs
    x = x_ref[...].astype(jnp.float32)                  # [1, HW, C]
    mean = jnp.mean(x, axis=1, keepdims=True)
    var = jnp.mean(jnp.square(x - mean), axis=1, keepdims=True)
    y = (x - mean) * jax.lax.rsqrt(var + eps)
    y = y * g_ref[...] + b_ref[...]
    if relu:
        y = jnp.maximum(y, 0.0)
    if has_res:
        y = y + r_ref[...].astype(jnp.float32)
    o_ref[...] = y.astype(o_ref.dtype)


def _inorm_stats_kernel(x_ref, mean_ref, rstd_ref, *, inv_hw, eps):
    t = pl.program_id(1)

    @pl.when(t == 0)
    def _():
        mean_ref[...] = jnp.zeros_like(mean_ref)
        rstd_ref[...] = jnp.zeros_like(rstd_ref)

    x = x_ref[...].astype(jnp.float32)                  # [1, thw, C]
    mean_ref[...] += jnp.sum(x, axis=1, keepdims=True)
    rstd_ref[...] += jnp.sum(x * x, axis=1, keepdims=True)

    @pl.when(t == pl.num_programs(1) - 1)
    def _():
        m = mean_ref[...] * inv_hw
        var = rstd_ref[...] * inv_hw - m * m
        mean_ref[...] = m
        rstd_ref[...] = jax.lax.rsqrt(var + eps)


def _inorm_apply_kernel(*refs, relu, has_res):
    if has_res:
        x_ref, mean_ref, rstd_ref, g_ref, b_ref, r_ref, o_ref = refs
    else:
        x_ref, mean_ref, rstd_ref, g_ref, b_ref, o_ref = refs
    x = x_ref[...].astype(jnp.float32)
    y = (x - mean_ref[...]) * rstd_ref[...]
    y = y * g_ref[...] + b_ref[...]
    if relu:
        y = jnp.maximum(y, 0.0)
    if has_res:
        y = y + r_ref[...].astype(jnp.float32)
    o_ref[...] = y.astype(o_ref.dtype)


_INORM_FUSED_LIMIT = 2 * 1024 * 1024  # f32 bytes of one (HW, C) slab


def _pick_hw_tile(HW, C):
    budget = max(8, _INORM_FUSED_LIMIT // (4 * C))
    for cand in (4096, 2048, 1024, 512, 256, 128, 64, 32, 16, 8):
        if cand <= min(HW, budget) and HW % cand == 0:
            return cand
    return HW


def instance_norm(x, gamma, beta, relu=False, residual=None, eps=1e-5,
                  out_dtype=jnp.bfloat16, hw_tile=None):
    N, H, W, C = x.shape
    HW = H * W
    xr = x.reshape(N, HW, C)
    g = gamma.reshape(1, C).astype(jnp.float32)
    b = beta.reshape(1, C).astype(jnp.float32)
    rr = None if residual is None else residual.reshape(N, HW, C)
    has_res = rr is not None

    if hw_tile is None:
        hw_tile = HW if HW * C * 4 <= _INORM_FUSED_LIMIT else _pick_hw_tile(HW, C)
    hw_tile = min(hw_tile, HW)

    if hw_tile >= HW or HW % hw_tile != 0 or hw_tile % 8 != 0:
        # Fused single-block path (small HW*C).
        slab = lambda n: (n, 0, 0)
        in_specs = [pl.BlockSpec((1, HW, C), slab),
                    pl.BlockSpec((1, C), lambda n: (0, 0)),
                    pl.BlockSpec((1, C), lambda n: (0, 0))]
        ins = [xr, g, b]
        if has_res:
            in_specs.append(pl.BlockSpec((1, HW, C), slab))
            ins.append(rr)
        out = pl.pallas_call(
            functools.partial(_inorm_fused_kernel, relu=relu, eps=eps,
                              has_res=has_res),
            out_shape=jax.ShapeDtypeStruct((N, HW, C), out_dtype),
            grid=(N,),
            in_specs=in_specs,
            out_specs=pl.BlockSpec((1, HW, C), slab),
            compiler_params=pltpu.CompilerParams(
                dimension_semantics=("parallel",)),
        )(*ins)
        return out.reshape(N, H, W, C)

    # Tiled two-pass path (needed when the (HW, C) slab would blow VMEM).
    T = HW // hw_tile
    xspec = pl.BlockSpec((1, hw_tile, C), lambda n, t: (n, t, 0))
    sspec = pl.BlockSpec((1, 1, C), lambda n, t: (n, 0, 0))
    pspec = pl.BlockSpec((1, C), lambda n, t: (0, 0))

    mean, rstd = pl.pallas_call(
        functools.partial(_inorm_stats_kernel, inv_hw=1.0 / HW, eps=eps),
        out_shape=(jax.ShapeDtypeStruct((N, 1, C), jnp.float32),
                   jax.ShapeDtypeStruct((N, 1, C), jnp.float32)),
        grid=(N, T),
        in_specs=[xspec],
        out_specs=(sspec, sspec),
        compiler_params=pltpu.CompilerParams(
            dimension_semantics=("parallel", "arbitrary")),
    )(xr)

    ins = [xr, mean, rstd, g, b]
    in_specs = [xspec, sspec, sspec, pspec, pspec]
    if has_res:
        ins.append(rr)
        in_specs.append(xspec)
    out = pl.pallas_call(
        functools.partial(_inorm_apply_kernel, relu=relu, has_res=has_res),
        out_shape=jax.ShapeDtypeStruct((N, HW, C), out_dtype),
        grid=(N, T),
        in_specs=in_specs,
        out_specs=xspec,
        compiler_params=pltpu.CompilerParams(
            dimension_semantics=("parallel", "parallel")),
    )(*ins)
    return out.reshape(N, H, W, C)


# --------------------------------------------------------------------------
# Convolution wrappers (padding / im2col glue in plain JAX, matmul in Pallas)
# --------------------------------------------------------------------------
def _im2col(x, kh, kw, stride):
    N, H, W, C = x.shape
    oh = (H - kh) // stride + 1
    ow = (W - kw) // stride + 1
    cols = []
    for i in range(kh):
        for j in range(kw):
            cols.append(x[:, i:i + stride * oh:stride,
                           j:j + stride * ow:stride, :])
    patches = jnp.concatenate(cols, axis=-1)            # [N, oh, ow, kh*kw*C]
    return patches.reshape(N * oh * ow, kh * kw * C), (N, oh, ow)


def conv2d(x, w_hwio, bias=None, stride=1, reflect_pad=0, zero_pad=0,
           activation=None, out_dtype=jnp.bfloat16):
    kh, kw, cin, cout = w_hwio.shape
    x = x.astype(jnp.bfloat16)
    if reflect_pad:
        p = reflect_pad
        x = jnp.pad(x, ((0, 0), (p, p), (p, p), (0, 0)), mode="reflect")
    if zero_pad:
        p = zero_pad
        x = jnp.pad(x, ((0, 0), (p, p), (p, p), (0, 0)))
    patches, (N, oh, ow) = _im2col(x, kh, kw, stride)
    wmat = w_hwio.reshape(kh * kw * cin, cout)
    if bias is None:
        bias = jnp.zeros((cout,), jnp.float32)
    out = matmul_bias(patches, wmat, bias, activation=activation,
                      out_dtype=out_dtype)
    return out.reshape(N, oh, ow, cout)


def conv_transpose2d(x, w_hwio, bias, out_dtype=jnp.bfloat16):
    """ConvTranspose2d(k=3, stride=2, padding=1, output_padding=1).

    w_hwio is the weight of the *equivalent* stride-1 convolution (PyTorch
    ConvTranspose2d weight with in/out channels swapped and kernel spatially
    flipped).  Sub-pixel decomposition: one 2x2 im2col of the undilated input
    against a block-sparse [4*cin, 4*cout] weight, then parity interleave.
    """
    kh, kw, cin, cout = w_hwio.shape
    assert (kh, kw) == (3, 3)
    N, H, W, C = x.shape
    w = w_hwio.astype(jnp.float32)
    z = jnp.zeros((cin, cout), jnp.float32)
    # rows = 2x2 patch taps [x[a,b], x[a,b+1], x[a+1,b], x[a+1,b+1]]
    # cols = output parity classes [ee, eo, oe, oo]
    row0 = jnp.concatenate([w[1, 1], w[1, 0], w[0, 1], w[0, 0]], axis=1)
    row1 = jnp.concatenate([z,       w[1, 2], z,       w[0, 2]], axis=1)
    row2 = jnp.concatenate([z,       z,       w[2, 1], w[2, 0]], axis=1)
    row3 = jnp.concatenate([z,       z,       z,       w[2, 2]], axis=1)
    wbig = jnp.concatenate([row0, row1, row2, row3], axis=0)    # [4cin, 4cout]
    bias_big = jnp.tile(bias.astype(jnp.float32), 4)            # [4cout]

    xp = jnp.pad(x.astype(jnp.bfloat16), ((0, 0), (0, 1), (0, 1), (0, 0)))
    patches, _ = _im2col(xp, 2, 2, 1)                           # [N*H*W, 4cin]
    out = matmul_bias(patches, wbig, bias_big, out_dtype=out_dtype)
    out = out.reshape(N, H, W, 2, 2, cout)                      # [..., da, db, c]
    out = jnp.transpose(out, (0, 1, 3, 2, 4, 5))                # [N,H,2,W,2,c]
    return out.reshape(N, 2 * H, 2 * W, cout)


# --------------------------------------------------------------------------
# Pure-JAX references (used only for in-script self-checks)
# --------------------------------------------------------------------------
def _ref_instance_norm(x, g, b, relu=False, residual=None, eps=1e-5):
    xf = x.astype(jnp.float32)
    m = xf.mean(axis=(1, 2), keepdims=True)
    v = ((xf - m) ** 2).mean(axis=(1, 2), keepdims=True)
    y = (xf - m) * jax.lax.rsqrt(v + eps) * g + b
    if relu:
        y = jnp.maximum(y, 0.0)
    if residual is not None:
        y = y + residual.astype(jnp.float32)
    return y


def _ref_conv_transpose(x, w, b):
    N, H, W, C = x.shape
    kh, kw, cin, cout = w.shape
    xd = jnp.zeros((N, 2 * H - 1, 2 * W - 1, C), jnp.float32)
    xd = xd.at[:, ::2, ::2, :].set(x.astype(jnp.float32))
    xd = jnp.pad(xd, ((0, 0), (1, 2), (1, 2), (0, 0)))
    out = jnp.zeros((N, 2 * H, 2 * W, cout), jnp.float32)
    for i in range(kh):
        for j in range(kw):
            out = out + jnp.einsum("nhwc,cd->nhwd",
                                   xd[:, i:i + 2 * H, j:j + 2 * W, :],
                                   w[i, j].astype(jnp.float32))
    return out + b.astype(jnp.float32)


# --------------------------------------------------------------------------
# Generator parameters + forward pass (mirrors the PyTorch nn.Sequential)
# --------------------------------------------------------------------------
def init_params(key):
    keys = iter(jax.random.split(key, 64))

    def conv_w(kh, kw, cin, cout):
        return (jax.random.normal(next(keys), (kh, kw, cin, cout), jnp.float32)
                / jnp.sqrt(float(kh * kw * cin)))

    def vec(c, scale=0.02):
        return jax.random.normal(next(keys), (c,), jnp.float32) * scale

    p = {}
    p["c1_w"] = conv_w(7, 7, 3, 64)
    p["c1_b"] = vec(64)
    p["in1_g"], p["in1_b"] = jnp.ones((64,), jnp.float32), jnp.zeros((64,), jnp.float32)
    p["c2_w"] = conv_w(3, 3, 64, 128)                         # bias=False
    p["in2_g"], p["in2_b"] = 1.0 + vec(128), vec(128)         # affine=True
    p["c3_w"] = conv_w(3, 3, 128, 256)                        # bias=False
    p["in3_g"], p["in3_b"] = 1.0 + vec(256), vec(256)         # affine=True
    res = []
    for _ in range(9):
        res.append(dict(
            w1=conv_w(3, 3, 256, 256), b1=vec(256),
            g1=jnp.ones((256,), jnp.float32), be1=jnp.zeros((256,), jnp.float32),
            w2=conv_w(3, 3, 256, 256), b2=vec(256),
            g2=jnp.ones((256,), jnp.float32), be2=jnp.zeros((256,), jnp.float32),
        ))
    p["res"] = res
    p["d1_w"] = conv_w(3, 3, 256, 128)
    p["d1_b"] = vec(128)
    p["din1_g"], p["din1_b"] = jnp.ones((128,), jnp.float32), jnp.zeros((128,), jnp.float32)
    p["d2_w"] = conv_w(3, 3, 128, 64)
    p["d2_b"] = vec(64)
    p["din2_g"], p["din2_b"] = jnp.ones((64,), jnp.float32), jnp.zeros((64,), jnp.float32)
    p["c4_w"] = conv_w(7, 7, 64, 3)                           # bias=False
    return p


def generator_forward(params, x_nchw):
    p = params
    x = jnp.transpose(x_nchw, (0, 2, 3, 1)).astype(jnp.bfloat16)  # NCHW -> NHWC

    # ReflectionPad2d(3) + Conv2d(3,64,7) + IN + ReLU
    y = conv2d(x, p["c1_w"], p["c1_b"], stride=1, reflect_pad=3)
    y = instance_norm(y, p["in1_g"], p["in1_b"], relu=True)
    # Conv2d(64,128,3,s=2,p=1,bias=False) + IN(affine) + ReLU
    y = conv2d(y, p["c2_w"], None, stride=2, zero_pad=1)
    y = instance_norm(y, p["in2_g"], p["in2_b"], relu=True)
    # Conv2d(128,256,3,s=2,p=1,bias=False) + IN(affine) + ReLU
    y = conv2d(y, p["c3_w"], None, stride=2, zero_pad=1)
    y = instance_norm(y, p["in3_g"], p["in3_b"], relu=True)

    # 9 x ResidualBlock(256)
    for rb in p["res"]:
        h = conv2d(y, rb["w1"], rb["b1"], stride=1, reflect_pad=1)
        h = instance_norm(h, rb["g1"], rb["be1"], relu=True)
        h = conv2d(h, rb["w2"], rb["b2"], stride=1, reflect_pad=1)
        y = instance_norm(h, rb["g2"], rb["be2"], relu=False, residual=y)

    # ConvTranspose2d(256,128,3,s=2,p=1,op=1) + IN + ReLU
    y = conv_transpose2d(y, p["d1_w"], p["d1_b"])
    y = instance_norm(y, p["din1_g"], p["din1_b"], relu=True)
    # ConvTranspose2d(128,64,3,s=2,p=1,op=1) + IN + ReLU
    y = conv_transpose2d(y, p["d2_w"], p["d2_b"])
    y = instance_norm(y, p["din2_g"], p["din2_b"], relu=True)
    # ReflectionPad2d(3) + Conv2d(64,3,7,bias=False) + Tanh (fused in matmul)
    y = conv2d(y, p["c4_w"], None, stride=1, reflect_pad=3,
               activation="tanh", out_dtype=jnp.float32)

    return jnp.transpose(y, (0, 3, 1, 2))  # NHWC -> NCHW


if __name__ == "__main__":
    key = jax.random.PRNGKey(0)
    pkey, xkey, k1, k2, k3, k4, k5, k6, k7 = jax.random.split(key, 9)

    # --- self-check 1: tiled InstanceNorm path (forced HW tiling) ---
    cx = jax.random.normal(k1, (2, 8, 8, 16), jnp.float32)
    cg = 1.0 + 0.1 * jax.random.normal(k2, (16,), jnp.float32)
    cb = 0.1 * jax.random.normal(k3, (16,), jnp.float32)
    cres = jax.random.normal(k4, (2, 8, 8, 16), jnp.float32)
    got = instance_norm(cx.astype(jnp.bfloat16), cg, cb, relu=True,
                        hw_tile=16).astype(jnp.float32)
    ref = _ref_instance_norm(cx, cg, cb, relu=True)
    assert float(jnp.max(jnp.abs(got - ref))) < 0.1
    got = instance_norm(cx.astype(jnp.bfloat16), cg, cb, relu=False,
                        residual=cres.astype(jnp.bfloat16),
                        hw_tile=16).astype(jnp.float32)
    ref = _ref_instance_norm(cx, cg, cb, relu=False, residual=cres)
    assert float(jnp.max(jnp.abs(got - ref))) < 0.1

    # --- self-check 2: sub-pixel transposed conv vs. dilated reference ---
    tx = jax.random.normal(k5, (1, 4, 4, 8), jnp.float32)
    tw = jax.random.normal(k6, (3, 3, 8, 8), jnp.float32) / 3.0
    tb = 0.1 * jax.random.normal(k7, (8,), jnp.float32)
    got = conv_transpose2d(tx.astype(jnp.bfloat16), tw, tb,
                           out_dtype=jnp.float32)
    ref = _ref_conv_transpose(tx, tw, tb)
    assert float(jnp.max(jnp.abs(got - ref))) < 0.1

    # --- full generator forward ---
    params = init_params(pkey)
    x = jax.random.normal(xkey, (2, 3, 16, 16), jnp.float32)  # NCHW like torch
    fwd = jax.jit(generator_forward)
    out = jax.block_until_ready(fwd(params, x))

    assert out.shape == (2, 3, 16, 16), out.shape
    assert bool(jnp.all(jnp.isfinite(out)))
    assert bool(jnp.all(jnp.abs(out) <= 1.0))  # tanh output range
    print("KERNEL_OK")
</pallas_src>

<mosaic_0001>
module attributes {stable_mosaic.version = 11 : i64} {
  func.func @_inorm_stats_kernel(%arg0: i32, %arg1: i32, %arg2: memref<1x16x16xbf16, #tpu.memory_space<vmem>>, %arg3: memref<1x1x16xf32, #tpu.memory_space<vmem>>, %arg4: memref<1x1x16xf32, #tpu.memory_space<vmem>>) attributes {dimension_semantics = [#tpu.dimension_semantics<parallel>, #tpu.dimension_semantics<arbitrary>], iteration_bounds = array<i64: 2, 4>, scalar_prefetch = 0 : i64, scratch_operands = 0 : i64, tpu.core_type = #tpu.core_type<tc>, window_params = [{transform_indices = @transform_0, window_bounds = array<i64: 1, 16, 16>}, {transform_indices = @transform_1, window_bounds = array<i64: 1, 1, 16>}, {transform_indices = @transform_2, window_bounds = array<i64: 1, 1, 16>}]} {
    %c0_i32 = arith.constant 0 : i32
    %0 = arith.cmpi eq, %arg1, %c0_i32 : i32
    %1 = arith.extui %0 : i1 to i32
    %c0_i32_0 = arith.constant 0 : i32
    %2 = arith.cmpi ne, %1, %c0_i32_0 : i32
    scf.if %2 {
      %cst_17 = arith.constant 0.000000e+00 : f32
      %19 = vector.broadcast %cst_17 : f32 to vector<1x1x16xf32>
      %c0_18 = arith.constant 0 : index
      %c0_19 = arith.constant 0 : index
      %c0_20 = arith.constant 0 : index
      %20 = vector.load %arg3[%c0_18, %c0_19, %c0_20] : memref<1x1x16xf32, #tpu.memory_space<vmem>>, vector<1x1x16xf32>
      tpu.vector_store %arg3[%c0_18, %c0_19, %c0_20], %19 {strides = array<i32>} : memref<1x1x16xf32, #tpu.memory_space<vmem>>, vector<1x1x16xf32>,
      %cst_21 = arith.constant 0.000000e+00 : f32
      %21 = vector.broadcast %cst_21 : f32 to vector<1x1x16xf32>
      %c0_22 = arith.constant 0 : index
      %c0_23 = arith.constant 0 : index
      %c0_24 = arith.constant 0 : index
      %22 = vector.load %arg4[%c0_22, %c0_23, %c0_24] : memref<1x1x16xf32, #tpu.memory_space<vmem>>, vector<1x1x16xf32>
      tpu.vector_store %arg4[%c0_22, %c0_23, %c0_24], %21 {strides = array<i32>} : memref<1x1x16xf32, #tpu.memory_space<vmem>>, vector<1x1x16xf32>,
    } else {
    }
    %c0 = arith.constant 0 : index
    %c0_1 = arith.constant 0 : index
    %c0_2 = arith.constant 0 : index
    %3 = vector.load %arg2[%c0, %c0_1, %c0_2] : memref<1x16x16xbf16, #tpu.memory_space<vmem>>, vector<1x16x16xbf16>
    %4 = arith.extf %3 : vector<1x16x16xbf16> to vector<1x16x16xf32>
    %c0_3 = arith.constant 0 : index
    %c0_4 = arith.constant 0 : index
    %c0_5 = arith.constant 0 : index
    %5 = vector.load %arg3[%c0_3, %c0_4, %c0_5] : memref<1x1x16xf32, #tpu.memory_space<vmem>>, vector<1x1x16xf32>
    %cst = arith.constant dense<0.000000e+00> : vector<1x16xf32>
    %6 = vector.multi_reduction <add>, %4, %cst [1] : vector<1x16x16xf32> to vector<1x16xf32>
    %7 = vector.shape_cast %6 : vector<1x16xf32> to vector<1x1x16xf32>
    %8 = arith.addf %5, %7 : vector<1x1x16xf32>
    %c0_6 = arith.constant 0 : index
    %c0_7 = arith.constant 0 : index
    %c0_8 = arith.constant 0 : index
    %9 = vector.load %arg3[%c0_6, %c0_7, %c0_8] : memref<1x1x16xf32, #tpu.memory_space<vmem>>, vector<1x1x16xf32>
    tpu.vector_store %arg3[%c0_6, %c0_7, %c0_8], %8 {strides = array<i32>} : memref<1x1x16xf32, #tpu.memory_space<vmem>>, vector<1x1x16xf32>,
    %c0_9 = arith.constant 0 : index
    %c0_10 = arith.constant 0 : index
    %c0_11 = arith.constant 0 : index
    %10 = vector.load %arg4[%c0_9, %c0_10, %c0_11] : memref<1x1x16xf32, #tpu.memory_space<vmem>>, vector<1x1x16xf32>
    %11 = arith.mulf %4, %4 : vector<1x16x16xf32>
    %cst_12 = arith.constant dense<0.000000e+00> : vector<1x16xf32>
    %12 = vector.multi_reduction <add>, %11, %cst_12 [1] : vector<1x16x16xf32> to vector<1x16xf32>
    %13 = vector.shape_cast %12 : vector<1x16xf32> to vector<1x1x16xf32>
    %14 = arith.addf %10, %13 : vector<1x1x16xf32>
    %c0_13 = arith.constant 0 : index
    %c0_14 = arith.constant 0 : index
    %c0_15 = arith.constant 0 : index
    %15 = vector.load %arg4[%c0_13, %c0_14, %c0_15] : memref<1x1x16xf32, #tpu.memory_space<vmem>>, vector<1x1x16xf32>
    tpu.vector_store %arg4[%c0_13, %c0_14, %c0_15], %14 {strides = array<i32>} : memref<1x1x16xf32, #tpu.memory_space<vmem>>, vector<1x1x16xf32>,
    %c3_i32 = arith.constant 3 : i32
    %16 = arith.cmpi eq, %arg1, %c3_i32 : i32
    %17 = arith.extui %16 : i1 to i32
    %c0_i32_16 = arith.constant 0 : i32
    %18 = arith.cmpi ne, %17, %c0_i32_16 : i32
    scf.if %18 {
      %c0_17 = arith.constant 0 : index
      %c0_18 = arith.constant 0 : index
      %c0_19 = arith.constant 0 : index
      %19 = vector.load %arg3[%c0_17, %c0_18, %c0_19] : memref<1x1x16xf32, #tpu.memory_space<vmem>>, vector<1x1x16xf32>
      %cst_20 = arith.constant 1.562500e-02 : f32
      %20 = vector.broadcast %cst_20 : f32 to vector<1x1x16xf32>
      %21 = arith.mulf %19, %20 : vector<1x1x16xf32>
      %c0_21 = arith.constant 0 : index
      %c0_22 = arith.constant 0 : index
      %c0_23 = arith.constant 0 : index
      %22 = vector.load %arg4[%c0_21, %c0_22, %c0_23] : memref<1x1x16xf32, #tpu.memory_space<vmem>>, vector<1x1x16xf32>
      %cst_24 = arith.constant 1.562500e-02 : f32
      %23 = vector.broadcast %cst_24 : f32 to vector<1x1x16xf32>
      %24 = arith.mulf %22, %23 : vector<1x1x16xf32>
      %25 = arith.mulf %21, %21 : vector<1x1x16xf32>
      %26 = arith.subf %24, %25 : vector<1x1x16xf32>
      %c0_25 = arith.constant 0 : index
      %c0_26 = arith.constant 0 : index
      %c0_27 = arith.constant 0 : index
      %27 = vector.load %arg3[%c0_25, %c0_26, %c0_27] : memref<1x1x16xf32, #tpu.memory_space<vmem>>, vector<1x1x16xf32>
      tpu.vector_store %arg3[%c0_25, %c0_26, %c0_27], %21 {strides = array<i32>} : memref<1x1x16xf32, #tpu.memory_space<vmem>>, vector<1x1x16xf32>,
      %cst_28 = arith.constant 9.99999974E-6 : f32
      %28 = vector.broadcast %cst_28 : f32 to vector<1x1x16xf32>
      %29 = arith.addf %26, %28 : vector<1x1x16xf32>
      %30 = math.rsqrt %29 : vector<1x1x16xf32>
      %c0_29 = arith.constant 0 : index
      %c0_30 = arith.constant 0 : index
      %c0_31 = arith.constant 0 : index
      %31 = vector.load %arg4[%c0_29, %c0_30, %c0_31] : memref<1x1x16xf32, #tpu.memory_space<vmem>>, vector<1x1x16xf32>
      tpu.vector_store %arg4[%c0_29, %c0_30, %c0_31], %30 {strides = array<i32>} : memref<1x1x16xf32, #tpu.memory_space<vmem>>, vector<1x1x16xf32>,
    } else {
    }
    return
  }
  func.func @transform_0(%arg0: i32, %arg1: i32) -> (i32, i32, i32) {
    %c0_i32 = arith.constant 0 : i32
    %c0_i32_0 = arith.constant 0 : i32
    return %arg0, %arg1, %c0_i32 : i32, i32, i32
  }
  func.func @transform_1(%arg0: i32, %arg1: i32) -> (i32, i32, i32) {
    %c0_i32 = arith.constant 0 : i32
    %c0_i32_0 = arith.constant 0 : i32
    %c0_i32_1 = arith.constant 0 : i32
    return %arg0, %c0_i32, %c0_i32_0 : i32, i32, i32
  }
  func.func @transform_2(%arg0: i32, %arg1: i32) -> (i32, i32, i32) {
    %c0_i32 = arith.constant 0 : i32
    %c0_i32_0 = arith.constant 0 : i32
    %c0_i32_1 = arith.constant 0 : i32
    return %arg0, %c0_i32, %c0_i32_0 : i32, i32, i32
  }
}

</mosaic_0001>

<llo_original>
// kernel: tpu_custom_call.1
$region0: #{tpu_custom_call.1}
  #allocation0 [shape = 'u32[]', space=smem, size = 0x4, offset = 0x4, fixed_abs, tag = 'smem constant byte address 0x4 - core index']
  #allocation1 [shape = 'u32[144,128]{1,0:T(1,128)}', space=vmem, size = 0x12000, scoped, tag = 'internal scratch']
  %s0 = inlined_call_operand.vmem [shape: bf16[2,64,16], index: 0, kind: input, shape index: {}]
  %s1 = inlined_call_operand.hbm [shape: f32[2,1,16], index: 1, kind: output, shape index: {0}]
  %s2 = inlined_call_operand.hbm [shape: f32[2,1,16], index: 2, kind: output, shape index: {1}]
  %3 = xla_tuple %s1, %s2
  %s4 = sld [smem:[#allocation0]]
  $region53: #{tpu_custom_call.1} parent=0
    _
  %s6 = ssub.s32 1, %s4
  %s7 = scalar_select 0, %s6, %s4
  $region1: #{tpu_custom_call.1} parent=0
    #allocation2 [shape = 'u8[1024]{0}', space=vmem, size = 0x400, scoped, tag = 'output window, operand 0']
    #allocation3 [shape = 's32[2]{0}', space=sflag, size = 0x8, scoped, tag = 'scoped memory for tpu_custom_call.1']
    #allocation4 [shape = 'u8[1024]{0}', space=vmem, size = 0x400, scoped, tag = 'output window, operand 1']
    #allocation5 [shape = 's32[2]{0}', space=sflag, size = 0x8, scoped, tag = 'scoped memory for tpu_custom_call.1']
    %8 = vsyncpa [#allocation3], 0
    %s9 = scalar_lea.sflag [#allocation3], 1
    %10 = vsyncpa %s9, 0
    %11 = vsyncpa [#allocation5], 0
    %s12 = scalar_lea.sflag [#allocation5], 1
    %13 = vsyncpa %s12, 0
    loop: start=0, step=1, limit=10
    $region2: #{tpu_custom_call.1} parent=1 // loop_pre_header
      _
    $region3: #{tpu_custom_call.1} parent=1 // loop_header
      %s15 = sphi 0, %s19
      %p16 = scmp.ge.s32.totalorder %s15, 10
      %s22 = sphi 0, %s34
      %s23 = sphi 0, %s30
      %s24 = sphi 0, %s22
      %s25 = sphi 0, %s23
      %s26 = sphi 0, %s24
      %s27 = sphi 0, %s25
      %s39 = sphi 0, %s41
      %s42 = sphi 0, %s39
      %s43 = sphi 0, %s42
      %s59 = sphi 0, %s43
      %s65 = sphi 0, %s67
      %s68 = sphi 0, %s65
      %s69 = sphi 0, %s68
      %s85 = sphi 0, %s69
      %s91 = sphi 0, %s93
      %s94 = sphi 0, %s91
      %s95 = sphi 0, %s94
      %s111 = sphi 0, %s95
    $region4: #{tpu_custom_call.1} parent=1 // loop_header_branch
      %18 = sbr.rel (%p16) target = $region8
    $region5: #{tpu_custom_call.1} parent=1 // loop_body
      %s20 = ssub.s32 %s15, 1
      %s21 = ssub.s32 %s15, 2
      %s28 = sadd.s32 1, %s23
      %p29 = scmp.ge.s32.totalorder %s28, 4
      %s30 = scalar_select %p29, 0, %s28
      %s31 = sadd.s32 1, %s22
      %s32 = scalar_select %p29, %s31, %s22
      %p33 = scmp.ge.s32.totalorder %s32, 2
      %s34 = scalar_select %p33, 0, %s32
      %s35 = ssub.s32 %s22, %s34
      %s36 = ssub.s32 %s23, %s30
      %s37 = sor.u32 %s35, %s36
      %p38 = scmp.eq.s32.totalorder %s37, 0
      %s40 = sadd.s32 %s39, 1
      %s41 = scalar_select %p38, %s39, %s40
      %p44 = pneg %p38
      %p45 = scmp.eq.s32.totalorder %s15, 7
      %p46 = por %p44, %p45
      %p47 = scmp.ne.s32.totalorder %s39, %s42
      %p48 = scmp.eq.s32.totalorder %s15, 0
      %p49 = por %p47, %p48
      %p50 = scmp.ne.s32.totalorder %s39, %s42
      %p51 = scmp.eq.s32.totalorder %s20, 7
      %p52 = por %p50, %p51
      %p53 = scmp.ne.s32.totalorder %s42, %s43
      %p54 = scmp.eq.s32.totalorder %s20, 0
      %p55 = por %p53, %p54
      %p56 = scmp.ne.s32.totalorder %s42, %s43
      %p57 = scmp.eq.s32.totalorder %s21, 7
      %p58 = por %p56, %p57
      %p60 = scmp.ne.s32.totalorder %s43, %s59
      %p61 = scmp.eq.s32.totalorder %s21, 0
      %p62 = por %p60, %p61
      %s63 = ssub.s32 %s22, %s34
      %p64 = scmp.eq.s32.totalorder %s63, 0
      %s66 = sadd.s32 %s65, 1
      %s67 = scalar_select %p64, %s65, %s66
      %p70 = pneg %p64
      %p71 = scmp.eq.s32.totalorder %s15, 7
      %p72 = por %p70, %p71
      %p73 = scmp.ne.s32.totalorder %s65, %s68
      %p74 = scmp.eq.s32.totalorder %s15, 0
      %p75 = por %p73, %p74
      %p76 = scmp.ne.s32.totalorder %s65, %s68
      %p77 = scmp.eq.s32.totalorder %s20, 7
      %p78 = por %p76, %p77
      %p79 = scmp.ne.s32.totalorder %s68, %s69
      %p80 = scmp.eq.s32.totalorder %s20, 0
      %p81 = por %p79, %p80
      %p82 = scmp.ne.s32.totalorder %s68, %s69
      %p83 = scmp.eq.s32.totalorder %s21, 7
      %p84 = por %p82, %p83
      %p86 = scmp.ne.s32.totalorder %s69, %s85
      %p87 = scmp.eq.s32.totalorder %s21, 0
      %p88 = por %p86, %p87
      %s89 = ssub.s32 %s22, %s34
      %p90 = scmp.eq.s32.totalorder %s89, 0
      %s92 = sadd.s32 %s91, 1
      %s93 = scalar_select %p90, %s91, %s92
      %p96 = pneg %p90
      %p97 = scmp.eq.s32.totalorder %s15, 7
      %p98 = por %p96, %p97
      %p99 = scmp.ne.s32.totalorder %s91, %s94
      %p100 = scmp.eq.s32.totalorder %s15, 0
      %p101 = por %p99, %p100
      %p102 = scmp.ne.s32.totalorder %s91, %s94
      %p103 = scmp.eq.s32.totalorder %s20, 7
      %p104 = por %p102, %p103
      %p105 = scmp.ne.s32.totalorder %s94, %s95
      %p106 = scmp.eq.s32.totalorder %s20, 0
      %p107 = por %p105, %p106
      %p108 = scmp.ne.s32.totalorder %s94, %s95
      %p109 = scmp.eq.s32.totalorder %s21, 7
      %p110 = por %p108, %p109
      %p112 = scmp.ne.s32.totalorder %s95, %s111
      %p113 = scmp.eq.s32.totalorder %s21, 0
      %p114 = por %p112, %p113
      %p115 = scmp.le.s32.totalorder 1, %s15
      %p116 = scmp.lt.s32.totalorder %s15, 9
      %p117 = pnand %p115, %p116
      %p118 = pneg %p117
      // Predicated region
      $region9: #{tpu_custom_call.1} parent=5 // pred_check
        _
      $region10: #{tpu_custom_call.1} parent=5 // pred_check_branch
        %120 = sbr.rel (%p117) target = $region12
      $region11: #{tpu_custom_call.1} parent=5 // pred_region
        %s121 = ssub.s32 %s15, 1
      $region12: #{tpu_custom_call.1} parent=5 // pred_fallthru
        _
      %p122 = scmp.lt.s32.totalorder %s15, 8
      // Predicated region
      $region13: #{tpu_custom_call.1} parent=5 // pred_check
        %p123 = pneg %p122
      $region14: #{tpu_custom_call.1} parent=5 // pred_check_branch
        %125 = sbr.rel (%p123) target = $region16
      $region15: #{tpu_custom_call.1} parent=5 // pred_region
        // Predicated region
        $region17: #{tpu_custom_call.1} parent=15 // pred_check
          %p126 = pneg %p49
        $region18: #{tpu_custom_call.1} parent=15 // pred_check_branch
          %128 = sbr.rel (%p126) target = $region20
        $region19: #{tpu_custom_call.1} parent=15 // pred_region
          %s129 = smul.u32 2, %s23
          %p130 = scmp.lt.s32.totalorder %s22, 1
          %s131 = scalar_select %p130, %s22, 1
          %p132 = scmp.lt.s32.totalorder %s129, 7
          %s133 = scalar_select %p132, %s129, 7
          %s134 = smul.addr %s131, 8
          %s135 = sadd.s32 %s133, %s134
          %s136 = smul.addr %s135, 4
          %s137 = scalar_lea.vmem %s0, %s136
          %s138 = smul.u32 2, %s23
        $region20: #{tpu_custom_call.1} parent=15 // pred_fallthru
          _
      $region16: #{tpu_custom_call.1} parent=5 // pred_fallthru
        _
      %p139 = scmp.le.s32.totalorder 1, %s15
      %p140 = scmp.lt.s32.totalorder %s15, 9
      %p141 = pnand %p139, %p140
      %p142 = pneg %p141
      // Predicated region
      $region21: #{tpu_custom_call.1} parent=5 // pred_check
        _
      $region22: #{tpu_custom_call.1} parent=5 // pred_check_branch
        %144 = sbr.rel (%p141) target = $region24
      $region23: #{tpu_custom_call.1} parent=5 // pred_region
        %s145 = ssub.s32 %s15, 1
        %s146 = smul.u32 2, %s25
        %p147 = scmp.lt.s32.totalorder %s24, 1
        %s148 = scalar_select %p147, %s24, 1
        %p149 = scmp.lt.s32.totalorder %s146, 7
        %s150 = scalar_select %p149, %s146, 7
        %s151 = smul.addr %s148, 8
        %s152 = sadd.s32 %s150, %s151
        %s153 = smul.addr %s152, 4
        %s154 = scalar_lea.vmem %s0, %s153
        %p155 = pneg %p55
        %p156 = pneg %p52
        %p157 = pneg %p81
        %p158 = pneg %p78
        %s159 = sand.u32 %s68, 1
        %s160 = scalar_lea.sflag [#allocation3], %s159
        %s161 = sand.u32 %s68, 1
        %s162 = scalar_lea.vmem [#allocation2], %s161
        %p163 = pneg %p107
        %p164 = pneg %p104
        %s165 = sand.u32 %s94, 1
        %s166 = scalar_lea.sflag [#allocation5], %s165
        %s167 = sand.u32 %s94, 1
        %s168 = scalar_lea.vmem [#allocation4], %s167
        %s169 = smul.u32 2, %s25
        %p170 = scmp.lt.s32.totalorder %s24, 1
        %s171 = scalar_select %p170, %s24, 1
        %p172 = scmp.lt.s32.totalorder %s169, 7
        %s173 = scalar_select %p172, %s169, 7
        %s174 = smul.addr %s171, 8
        %s175 = sadd.s32 %s173, %s174
        %s176 = smul.addr %s175, 4
        %s177 = scalar_lea.vmem %s0, %s176
        %s178 = smul.u32 2, %s25
        %p179 = scmp.eq.s32.totalorder %s25, 0
        // Predicated region
        $region25: #{tpu_custom_call.1} parent=23 // pred_check
          %p180 = pneg %p179
        $region26: #{tpu_custom_call.1} parent=23 // pred_check_branch
          %182 = sbr.rel (%p180) target = $region28
        $region27: #{tpu_custom_call.1} parent=23 // pred_region
          %vm183 = vcmask 122880
          %184 = vst.msk [vmem:[%s162] sm:$0x1] %vm183, 0.0
          %185 = vst.msk [vmem:[%s168] sm:$0x1] %vm183, 0.0
        $region28: #{tpu_custom_call.1} parent=23 // pred_fallthru
          _
        %v186 = vld [vmem:[%s177] sm:$0xf]
        %v187 = vld [vmem:[%s177 + $0x4] sm:$0xf]
        %v188 = vunpack.c.l.bf16 %v186
        %v189 = vunpack.c.l.bf16 %v187
        %v190 = vld [vmem:[%s162] sm:$0x1]
        %vm191 = vcmask 130048
        %v192 = vsel %vm191, %v188, 0.0
        %v193 = vsel %vm191, %v189, 0.0
        %v194 = vadd.f32 %v192, %v193
        %v195 = vrot.slane %v194, 4
        %v196 = vadd.f32 %v194, %v195
        %v197 = vrot.slane %v196, 2
        %v198 = vadd.f32 %v196, %v197
        %v199 = vrot.slane %v198, 1
        %v200 = vadd.f32 %v198, %v199
        %v201 = vadd.f32 %v190, %v200
        %vm202 = vcmask 122880
        %203 = vst.msk [vmem:[%s162] sm:$0x1] %vm202, %v201
        %v204 = vld [vmem:[%s168] sm:$0x1]
        %v205 = vmul.f32 %v188, %v188
        %v206 = vmul.f32 %v189, %v189
        %v207 = vsel %vm191, %v205, 0.0
        %v208 = vsel %vm191, %v206, 0.0
        %v209 = vadd.f32 %v207, %v208
        %v210 = vrot.slane %v209, 4
        %v211 = vadd.f32 %v209, %v210
        %v212 = vrot.slane %v211, 2
        %v213 = vadd.f32 %v211, %v212
        %v214 = vrot.slane %v213, 1
        %v215 = vadd.f32 %v213, %v214
        %v216 = vadd.f32 %v204, %v215
        %217 = vst.msk [vmem:[%s168] sm:$0x1] %vm202, %v216
        %p218 = scmp.eq.s32.totalorder %s25, 3
        // Predicated region
        $region29: #{tpu_custom_call.1} parent=23 // pred_check
          %p219 = pneg %p218
        $region30: #{tpu_custom_call.1} parent=23 // pred_check_branch
          %221 = sbr.rel (%p219) target = $region32
        $region31: #{tpu_custom_call.1} parent=23 // pred_region
          %v222 = vld [vmem:[%s162] sm:$0x1]
          %v223 = vmul.f32 %v222, 0.015625
          %v224 = vld [vmem:[%s168] sm:$0x1]
          %v225 = vmul.f32 %v224, 0.015625
          %v226 = vmul.f32 %v223, %v223
          %v227 = vsub.f32 %v225, %v226
          %228 = vst.msk [vmem:[%s162] sm:$0x1] %vm202, %v223
          %v229 = vadd.f32 %v227, 1e-05
          %v230 = vrsqrt.pop %v229
          %231 = vst.msk [vmem:[%s168] sm:$0x1] %vm202, %v230
        $region32: #{tpu_custom_call.1} parent=23 // pred_fallthru
          _
        %s232 = sand.u32 %s68, 1
        %s233 = scalar_lea.sflag [#allocation3], %s232
        %s234 = sand.u32 %s68, 1
        %s235 = scalar_lea.vmem [#allocation2], %s234
        %s236 = sand.u32 %s94, 1
        %s237 = scalar_lea.sflag [#allocation5], %s236
        %s238 = sand.u32 %s94, 1
        %s239 = scalar_lea.vmem [#allocation4], %s238
        // Predicated region
        $region33: #{tpu_custom_call.1} parent=23 // pred_check
          %p240 = pneg %p78
        $region34: #{tpu_custom_call.1} parent=23 // pred_check_branch
          %242 = sbr.rel (%p240) target = $region36
        $region35: #{tpu_custom_call.1} parent=23 // pred_region
          %s244 = ssub.s32 16, 16
          %245 = vsyncadd %s233, %s244
          %s246 = smul.addr %s24, 16
          %s247 = scalar_lea.hbm %s1, %s246
          %s249 = sshll.u32 %s235, 4
          %s250 = int_to_ptr.vmem [resolvable:$true] %s249
          %252 = dma.vmem_to_hbm [thread:$0]  %s250, 16, %s247, %s233
        $region36: #{tpu_custom_call.1} parent=23 // pred_fallthru
          _
        // Predicated region
        $region37: #{tpu_custom_call.1} parent=23 // pred_check
          %p253 = pneg %p104
        $region38: #{tpu_custom_call.1} parent=23 // pred_check_branch
          %255 = sbr.rel (%p253) target = $region40
        $region39: #{tpu_custom_call.1} parent=23 // pred_region
          %s257 = ssub.s32 16, 16
          %258 = vsyncadd %s237, %s257
          %s259 = smul.addr %s24, 16
          %s260 = scalar_lea.hbm %s2, %s259
          %s262 = sshll.u32 %s239, 4
          %s263 = int_to_ptr.vmem [resolvable:$true] %s262
          %265 = dma.vmem_to_hbm [thread:$0]  %s263, 16, %s260, %s237
        $region40: #{tpu_custom_call.1} parent=23 // pred_fallthru
          _
      $region24: #{tpu_custom_call.1} parent=5 // pred_fallthru
        _
      %p266 = scmp.le.s32.totalorder 2, %s15
      // Predicated region
      $region41: #{tpu_custom_call.1} parent=5 // pred_check
        %p267 = pneg %p266
      $region42: #{tpu_custom_call.1} parent=5 // pred_check_branch
        %269 = sbr.rel (%p267) target = $region44
      $region43: #{tpu_custom_call.1} parent=5 // pred_region
        %s270 = ssub.s32 %s15, 2
        // Predicated region
        $region45: #{tpu_custom_call.1} parent=43 // pred_check
          %p271 = pneg %p84
        $region46: #{tpu_custom_call.1} parent=43 // pred_check_branch
          %273 = sbr.rel (%p271) target = $region48
        $region47: #{tpu_custom_call.1} parent=43 // pred_region
          %s274 = sand.u32 %s69, 1
          %s275 = scalar_lea.sflag [#allocation3], %s274
          %s276 = sand.u32 %s69, 1
          %s277 = scalar_lea.vmem [#allocation2], %s276
          %278 = dma.done %s275, 16
        $region48: #{tpu_custom_call.1} parent=43 // pred_fallthru
          _
        // Predicated region
        $region49: #{tpu_custom_call.1} parent=43 // pred_check
          %p279 = pneg %p110
        $region50: #{tpu_custom_call.1} parent=43 // pred_check_branch
          %281 = sbr.rel (%p279) target = $region52
        $region51: #{tpu_custom_call.1} parent=43 // pred_region
          %s282 = sand.u32 %s95, 1
          %s283 = scalar_lea.sflag [#allocation5], %s282
          %s284 = sand.u32 %s95, 1
          %s285 = scalar_lea.vmem [#allocation4], %s284
          %286 = dma.done %s283, 16
        $region52: #{tpu_custom_call.1} parent=43 // pred_fallthru
          _
      $region44: #{tpu_custom_call.1} parent=5 // pred_fallthru
        _
    $region6: #{tpu_custom_call.1} parent=1 // loop_footer
      %s19 = sadd.s32 1, %s15
    $region7: #{tpu_custom_call.1} parent=1 // loop_footer_branch
      %14 = sbr.rel target = $region3
    $region8: #{tpu_custom_call.1} parent=1 // loop_exit
      _
    %287 = vsyncpa [#allocation3], 1
    %s288 = scalar_lea.sflag [#allocation3], 1
    %289 = vsyncpa %s288, 1
    %290 = vsyncpa [#allocation5], 1
    %s291 = scalar_lea.sflag [#allocation5], 1
    %292 = vsyncpa %s291, 1

</llo_original>
